<compile_context>
chip_gen: v6e
topology: v6e:2x2x1
jax: 0.10.0
libtpu: 0.0.40
codegen_flags: <defaults>
</compile_context>

<pallas_src>
import jax
import jax.numpy as jnp
from jax.experimental import pallas as pl
from jax.experimental.pallas import tpu as pltpu


def _vmem_capacity_bytes():
    """Physical VMEM capacity; conservative (v7x) fallback if the query fails."""
    try:
        cap = getattr(pltpu.get_tpu_info(), "vmem_capacity_bytes", None)
        if cap:
            return int(cap)
    except Exception:
        pass
    return 64 << 20


def _choose_tile(dim, target, quantum):
    """Return (tile, padded_dim).

    tile is either the full dim (if dim <= target), the largest quantum-multiple
    divisor of dim <= target, or the quantum-aligned target (in which case
    padded_dim is rounded up to a multiple of the tile)."""
    if dim <= target:
        return dim, dim                       # single full-extent block, no padding
    target = max(quantum, (target // quantum) * quantum)
    t = target
    while t >= quantum:
        if dim % t == 0:
            return t, dim
        t -= quantum
    padded = ((dim + target - 1) // target) * target
    return target, padded


def _linear_sum_kernel(xs_ref, w_ref, o_ref, acc_ref):
    # Grid: axis 0 = j (column tiles of W / x, "parallel"),
    #       axis 1 = i (row tiles of W, "arbitrary" reduction axis, innermost).
    i = pl.program_id(1)
    ni = pl.num_programs(1)

    @pl.when(i == 0)
    def _init():
        acc_ref[...] = jnp.zeros_like(acc_ref)

    # Per-lane column sums of this W tile (sublane reduction); accumulate over i.
    acc_ref[...] += jnp.sum(w_ref[...].astype(jnp.float32), axis=0, keepdims=True)

    @pl.when(i == ni - 1)
    def _finalize():
        # One multiply by colsum(x) and one cross-lane collapse per column tile.
        o_ref[0, 0] = jnp.sum(xs_ref[...] * acc_ref[...])


def linear_sum(x, weight, bias=None, *, tm_target=None, tk_target=None):
    """sum(x @ weight.T + bias), matching torch.nn.Linear(imgsz, imgsz)(x).sum()."""
    B, K = x.shape
    O, K2 = weight.shape
    assert K2 == K, (weight.shape, x.shape)

    # colsum over the batch -- B*K reads, negligible next to the O*K W stream.
    xsum = jnp.sum(x.astype(jnp.float32), axis=0, keepdims=True)  # (1, K)

    vmem_cap = _vmem_capacity_bytes()
    per_buf = min(vmem_cap // 4, 32 << 20)          # per-buffer W budget
    w_itemsize = jnp.dtype(weight.dtype).itemsize

    # Grow TK (lane / contiguous burst dim) first, then TM within the budget.
    if tk_target is None:
        tk_target = 4096
    TK, Kp = _choose_tile(K, tk_target, 128)

    if tm_target is None:
        max_rows = max(8, ((per_buf // (TK * w_itemsize)) // 8) * 8)
        tm_target = min(1024, max_rows)
    TM, Op = _choose_tile(O, tm_target, 8)

    # Zero-padding is an exact no-op for this reduction (xsum pad is zero too).
    if (Op, Kp) != (O, K):
        weight = jnp.pad(weight, ((0, Op - O), (0, Kp - K)))
    if Kp != K:
        xsum = jnp.pad(xsum, ((0, 0), (0, Kp - K)))

    n_j = Kp // TK
    n_i = Op // TM

    need = (2 * TM * TK * w_itemsize        # W double buffer
            + 2 * TK * 4                    # xsum double buffer
            + TK * 4                        # lane-accumulator scratch
            + (2 << 20))                    # headroom for internal scratch
    vmem_limit = int(min(max(need, 32 << 20), vmem_cap - (4 << 20)))

    partials = pl.pallas_call(
        _linear_sum_kernel,
        out_shape=jax.ShapeDtypeStruct((n_j, 1), jnp.float32),
        grid_spec=pltpu.PrefetchScalarGridSpec(
            num_scalar_prefetch=0,
            grid=(n_j, n_i),
            in_specs=[
                # colsum(x) tile: depends only on j -> resident across the i loop.
                pl.BlockSpec((1, TK), lambda j, i: (0, j)),
                # W tile over (out_features, in_features).
                pl.BlockSpec((TM, TK), lambda j, i: (i, j)),
            ],
            # One scalar partial per column tile, finalized at i == ni-1.
            out_specs=pl.BlockSpec((1, 1), lambda j, i: (j, 0),
                                   memory_space=pltpu.SMEM),
            scratch_shapes=[
                pltpu.VMEM((1, TK), jnp.float32),   # running per-lane accumulator
            ],
        ),
        compiler_params=pltpu.CompilerParams(
            dimension_semantics=("parallel", "arbitrary"),
            vmem_limit_bytes=vmem_limit,
        ),
    )(xsum, weight)

    result = jnp.sum(partials)
    if bias is not None:
        result = result + jnp.float32(B) * jnp.sum(bias.astype(jnp.float32))
    return result


if __name__ == "__main__":
    key = jax.random.PRNGKey(0)

    def make_case(k, batch, imgsz):
        kx, kw, kb = jax.random.split(k, 3)
        bound = 1.0 / (imgsz ** 0.5)
        w = jax.random.uniform(kw, (imgsz, imgsz), jnp.float32, -bound, bound)
        b = jax.random.uniform(kb, (imgsz,), jnp.float32, -bound, bound)
        x = jax.random.normal(kx, (batch, imgsz), jnp.float32)
        return x, w, b

    k1, k2, k3 = jax.random.split(key, 3)

    # Case 1: the module's nominal small shape (single-tile path).
    x, w, b = make_case(k1, 8, 32)
    out = jax.block_until_ready(linear_sum(x, w, b))
    ref = jnp.sum(x @ w.T + b)
    assert jnp.allclose(out, ref, rtol=5e-4, atol=1e-2), (out, ref)

    # Case 2: force a multi-tile grid (exercises the per-column-tile accumulator
    # reset/finalize and the "parallel" j axis) by shrinking the tile targets.
    x, w, b = make_case(k2, 4, 384)
    out = jax.block_until_ready(linear_sum(x, w, b, tm_target=128, tk_target=128))
    ref = jnp.sum(x @ w.T + b)
    assert jnp.allclose(out, ref, rtol=5e-4, atol=1e-2), (out, ref)

    # Case 3: non-divisible dims -> zero-padding path (and bias=None).
    x, w, _ = make_case(k3, 3, 200)
    out = jax.block_until_ready(linear_sum(x, w, None, tm_target=128, tk_target=128))
    ref = jnp.sum(x @ w.T)
    assert jnp.allclose(out, ref, rtol=5e-4, atol=1e-2), (out, ref)

    print("KERNEL_OK")
</pallas_src>

<mosaic_0001>
module attributes {stable_mosaic.version = 11 : i64} {
  func.func @_linear_sum_kernel(%arg0: i32, %arg1: i32, %arg2: memref<1x32xf32, #tpu.memory_space<vmem>>, %arg3: memref<32x32xf32, #tpu.memory_space<vmem>>, %arg4: memref<1x1xf32, #tpu.memory_space<smem>>, %arg5: memref<1x32xf32, #tpu.memory_space<vmem>>) attributes {dimension_semantics = [#tpu.dimension_semantics<parallel>, #tpu.dimension_semantics<arbitrary>], iteration_bounds = array<i64: 1, 1>, scalar_prefetch = 0 : i64, scratch_operands = 1 : i64, tpu.core_type = #tpu.core_type<tc>, window_params = [{transform_indices = @transform_0, window_bounds = array<i64: 1, 32>}, {transform_indices = @transform_1, window_bounds = array<i64: 32, 32>}, {transform_indices = @transform_2, window_bounds = array<i64: 1, 1>}]} {
    %c0_i32 = arith.constant 0 : i32
    %0 = arith.cmpi eq, %arg1, %c0_i32 : i32
    %1 = arith.extui %0 : i1 to i32
    %c0_i32_0 = arith.constant 0 : i32
    %2 = arith.cmpi ne, %1, %c0_i32_0 : i32
    scf.if %2 {
      %cst_8 = arith.constant 0.000000e+00 : f32
      %12 = vector.broadcast %cst_8 : f32 to vector<1x32xf32>
      %c0_9 = arith.constant 0 : index
      %c0_10 = arith.constant 0 : index
      %13 = vector.load %arg5[%c0_9, %c0_10] : memref<1x32xf32, #tpu.memory_space<vmem>>, vector<1x32xf32>
      tpu.vector_store %arg5[%c0_9, %c0_10], %12 {strides = array<i32>} : memref<1x32xf32, #tpu.memory_space<vmem>>, vector<1x32xf32>,
    } else {
    }
    %c0 = arith.constant 0 : index
    %c0_1 = arith.constant 0 : index
    %3 = vector.load %arg5[%c0, %c0_1] : memref<1x32xf32, #tpu.memory_space<vmem>>, vector<1x32xf32>
    %c0_2 = arith.constant 0 : index
    %c0_3 = arith.constant 0 : index
    %4 = vector.load %arg3[%c0_2, %c0_3] : memref<32x32xf32, #tpu.memory_space<vmem>>, vector<32x32xf32>
    %cst = arith.constant dense<0.000000e+00> : vector<32xf32>
    %5 = vector.multi_reduction <add>, %4, %cst [0] : vector<32x32xf32> to vector<32xf32>
    %6 = vector.shape_cast %5 : vector<32xf32> to vector<1x32xf32>
    %7 = arith.addf %3, %6 : vector<1x32xf32>
    %c0_4 = arith.constant 0 : index
    %c0_5 = arith.constant 0 : index
    %8 = vector.load %arg5[%c0_4, %c0_5] : memref<1x32xf32, #tpu.memory_space<vmem>>, vector<1x32xf32>
    tpu.vector_store %arg5[%c0_4, %c0_5], %7 {strides = array<i32>} : memref<1x32xf32, #tpu.memory_space<vmem>>, vector<1x32xf32>,
    %c0_i32_6 = arith.constant 0 : i32
    %9 = arith.cmpi eq, %arg1, %c0_i32_6 : i32
    %10 = arith.extui %9 : i1 to i32
    %c0_i32_7 = arith.constant 0 : i32
    %11 = arith.cmpi ne, %10, %c0_i32_7 : i32
    scf.if %11 {
      %c0_8 = arith.constant 0 : index
      %c0_9 = arith.constant 0 : index
      %12 = vector.load %arg2[%c0_8, %c0_9] : memref<1x32xf32, #tpu.memory_space<vmem>>, vector<1x32xf32>
      %c0_10 = arith.constant 0 : index
      %c0_11 = arith.constant 0 : index
      %13 = vector.load %arg5[%c0_10, %c0_11] : memref<1x32xf32, #tpu.memory_space<vmem>>, vector<1x32xf32>
      %14 = arith.mulf %12, %13 : vector<1x32xf32>
      %15 = vector.shape_cast %14 : vector<1x32xf32> to vector<1x1x32xf32>
      %cst_12 = arith.constant dense<0.000000e+00> : vector<1xf32>
      %16 = vector.multi_reduction <add>, %15, %cst_12 [1, 2] : vector<1x1x32xf32> to vector<1xf32>
      %17 = vector.shape_cast %16 : vector<1xf32> to vector<1x1x1xf32>
      %18 = vector.extract %17[0, 0, 0] : f32 from vector<1x1x1xf32>
      %c0_13 = arith.constant 0 : index
      %c0_14 = arith.constant 0 : index
      %19 = memref.load %arg4[%c0_13, %c0_14] : memref<1x1xf32, #tpu.memory_space<smem>>
      memref.store %18, %arg4[%c0_13, %c0_14] : memref<1x1xf32, #tpu.memory_space<smem>>
    } else {
    }
    return
  }
  func.func @transform_0(%arg0: i32, %arg1: i32) -> (i32, i32) {
    %c0_i32 = arith.constant 0 : i32
    %c0_i32_0 = arith.constant 0 : i32
    return %c0_i32, %arg0 : i32, i32
  }
  func.func @transform_1(%arg0: i32, %arg1: i32) -> (i32, i32) {
    %c0_i32 = arith.constant 0 : i32
    return %arg1, %arg0 : i32, i32
  }
  func.func @transform_2(%arg0: i32, %arg1: i32) -> (i32, i32) {
    %c0_i32 = arith.constant 0 : i32
    %c0_i32_0 = arith.constant 0 : i32
    return %arg0, %c0_i32 : i32, i32
  }
}

</mosaic_0001>

<llo_original>
// kernel: tpu_custom_call.1
$region0: #{tpu_custom_call.1}
  #allocation0 [shape = 'u32[]', space=smem, size = 0x4, offset = 0x4, fixed_abs, tag = 'smem constant byte address 0x4 - core index']
  #allocation1 [shape = 'u32[144,128]{1,0:T(1,128)}', space=vmem, size = 0x12000, scoped, tag = 'internal scratch']
  #allocation2 [shape = 'f32[1,32]{1,0:T(1,128)}', space=vmem, size = 0x200, scoped, tag = 'scratch operand']
  %s0 = inlined_call_operand.hbm [shape: f32[1,32], index: 0, kind: input, shape index: {}]
  %s1 = inlined_call_operand.hbm [shape: f32[32,32], index: 1, kind: input, shape index: {}]
  %s2 = inlined_call_operand.hbm [shape: f32[1,1], index: 2, kind: output, shape index: {}]
  %s3 = sld [smem:[#allocation0]]
  $region34: #{tpu_custom_call.1} parent=0
    _
  %s5 = ssub.s32 1, %s3
  %s6 = scalar_select 0, %s5, %s3
  $region1: #{tpu_custom_call.1} parent=0
    #allocation3 [shape = 'u8[512]{0}', space=vmem, size = 0x400, scoped, tag = 'input window, operand 0, single buffered']
    #allocation4 [shape = 's32[1]{0}', space=sflag, size = 0x4, scoped, tag = 'scoped memory for tpu_custom_call.1']
    #allocation5 [shape = 's32[1]{0}', space=sflag, size = 0x4, scoped, tag = 'scoped memory for tpu_custom_call.1']
    #allocation6 [shape = 'u8[16384]{0}', space=vmem, size = 0x4000, scoped, tag = 'input window, operand 1, single buffered']
    #allocation7 [shape = 's32[1]{0}', space=sflag, size = 0x4, scoped, tag = 'scoped memory for tpu_custom_call.1']
    #allocation8 [shape = 'u8[512]{0}', space=smem, size = 0x200, scoped, tag = 'output window, operand 0, single buffered']
    %7 = vsyncpa [#allocation4], 0
    %8 = vsyncpa [#allocation7], 0
    %9 = vsyncpa [#allocation5], 0
    // Predicated region
    $region2: #{tpu_custom_call.1} parent=1 // pred_check
      _
    $region3: #{tpu_custom_call.1} parent=1 // pred_check_branch
      %11 = sbr.rel (0) target = $region5
    $region4: #{tpu_custom_call.1} parent=1 // pred_region
      %s13 = ssub.s32 16, 16
      %14 = vsyncadd [#allocation4], %s13
      %s16 = sshll.u32 [#allocation3], 4
      %s17 = int_to_ptr.vmem [resolvable:$true] %s16
      %19 = dma.hbm_to_vmem [thread:$0]  %s0, 16, %s17, [#allocation4]
    $region5: #{tpu_custom_call.1} parent=1 // pred_fallthru
      _
    // Predicated region
    $region6: #{tpu_custom_call.1} parent=1 // pred_check
      _
    $region7: #{tpu_custom_call.1} parent=1 // pred_check_branch
      %21 = sbr.rel (0) target = $region9
    $region8: #{tpu_custom_call.1} parent=1 // pred_region
      %s23 = ssub.s32 512, 512
      %24 = vsyncadd [#allocation7], %s23
      %s25 = sshll.u32 [#allocation6], 4
      %s26 = int_to_ptr.vmem [resolvable:$true] %s25
      %31 = dma.hbm_to_vmem [thread:$0]  %s1, 512, %s26, [#allocation7], 128, 128, 8
    $region9: #{tpu_custom_call.1} parent=1 // pred_fallthru
      _
    // Predicated region
    $region10: #{tpu_custom_call.1} parent=1 // pred_check
      _
    $region11: #{tpu_custom_call.1} parent=1 // pred_check_branch
      %33 = sbr.rel (0) target = $region13
    $region12: #{tpu_custom_call.1} parent=1 // pred_region
      %34 = dma.done [#allocation4], 16
    $region13: #{tpu_custom_call.1} parent=1 // pred_fallthru
      _
    // Predicated region
    $region14: #{tpu_custom_call.1} parent=1 // pred_check
      _
    $region15: #{tpu_custom_call.1} parent=1 // pred_check_branch
      %36 = sbr.rel (0) target = $region17
    $region16: #{tpu_custom_call.1} parent=1 // pred_region
      %37 = dma.done [#allocation7], 512
    $region17: #{tpu_custom_call.1} parent=1 // pred_fallthru
      _
    %p38 = scmp.eq.s32.totalorder 0, 0
    // Predicated region
    $region18: #{tpu_custom_call.1} parent=1 // pred_check
      %p39 = pneg %p38
    $region19: #{tpu_custom_call.1} parent=1 // pred_check_branch
      %41 = sbr.rel (%p39) target = $region21
    $region20: #{tpu_custom_call.1} parent=1 // pred_region
      %vm42 = vcmask 253952
      %43 = vst.msk [vmem:[#allocation2] sm:$0x1] %vm42, 0.0
    $region21: #{tpu_custom_call.1} parent=1 // pred_fallthru
      _
    %v44 = vld [vmem:[#allocation2] sm:$0x1]
    %v45 = vld [vmem:[#allocation6] sm:$0xff]
    %v46 = vld [vmem:[#allocation6 + $0x8] sm:$0xff]
    %v47 = vld [vmem:[#allocation6 + $0x10] sm:$0xff]
    %v48 = vld [vmem:[#allocation6 + $0x18] sm:$0xff]
    %vm49 = vcmask 261120
    %v50 = vsel %vm49, %v45, 0.0
    %v51 = vsel %vm49, %v46, 0.0
    %v52 = vadd.f32 %v50, %v51
    %v53 = vsel %vm49, %v47, 0.0
    %v54 = vadd.f32 %v52, %v53
    %v55 = vsel %vm49, %v48, 0.0
    %v56 = vadd.f32 %v54, %v55
    %v57 = vrot.slane %v56, 4
    %v58 = vadd.f32 %v56, %v57
    %v59 = vrot.slane %v58, 2
    %v60 = vadd.f32 %v58, %v59
    %v61 = vrot.slane %v60, 1
    %v62 = vadd.f32 %v60, %v61
    %v63 = vadd.f32 %v44, %v62
    %vm64 = vcmask 253952
    %65 = vst.msk [vmem:[#allocation2] sm:$0x1] %vm64, %v63
    // Predicated region
    $region22: #{tpu_custom_call.1} parent=1 // pred_check
      %p66 = pneg %p38
    $region23: #{tpu_custom_call.1} parent=1 // pred_check_branch
      %68 = sbr.rel (%p66) target = $region25
    $region24: #{tpu_custom_call.1} parent=1 // pred_region
      %v69 = vld [vmem:[#allocation3] sm:$0x1]
      %v70 = vld [vmem:[#allocation2] sm:$0x1]
      %v71 = vmul.f32 %v69, %v70
      %v72 = vsel %vm64, %v71, 0.0
      %73 = vadd.xlane.f32.xlu0 %v72
      %v74 = vpop.xlane.xlu0 %73
      %v75 = vrot.slane %v74, 4
      %v76 = vadd.f32 %v74, %v75
      %v77 = vrot.slane %v76, 2
      %v78 = vadd.f32 %v76, %v77
      %v79 = vrot.slane %v78, 1
      %v80 = vadd.f32 %v78, %v79
      %s81 = vtos %v80
      %s82 = scalar_lea.smem [#allocation8], 0
      %83 = sst [smem:[%s82]] %s81
    $region25: #{tpu_custom_call.1} parent=1 // pred_fallthru
      _
    // Predicated region
    $region26: #{tpu_custom_call.1} parent=1 // pred_check
      _
    $region27: #{tpu_custom_call.1} parent=1 // pred_check_branch
      %85 = sbr.rel (0) target = $region29
    $region28: #{tpu_custom_call.1} parent=1 // pred_region
      %s87 = ssub.s32 16, 16
      %88 = vsyncadd [#allocation5], %s87
      %91 = dma.smem_to_hbm [#allocation8], 16, %s2, [#allocation5]
    $region29: #{tpu_custom_call.1} parent=1 // pred_fallthru
      _
    // Predicated region
    $region30: #{tpu_custom_call.1} parent=1 // pred_check
      _
    $region31: #{tpu_custom_call.1} parent=1 // pred_check_branch
      %93 = sbr.rel (0) target = $region33
    $region32: #{tpu_custom_call.1} parent=1 // pred_region
      %94 = dma.done [#allocation5], 16
    $region33: #{tpu_custom_call.1} parent=1 // pred_fallthru
      _
    %95 = sfence
    %96 = vsyncpa [#allocation4], 1
    %97 = vsyncpa [#allocation7], 1
    %98 = vsyncpa [#allocation5], 1

</llo_original>
